<compile_context>
chip_gen: v7x
topology: tpu7x:2x2x1
jax: 0.10.0
libtpu: 0.0.40
codegen_flags: <defaults>
</compile_context>

<pallas_src>
import jax
import jax.numpy as jnp
from jax.experimental import pallas as pl
from jax.experimental.pallas import tpu as pltpu


def _residual_adaptor_kernel(x_ref, halo_ref, w_ref, scale_ref, bias_ref,
                             o_ref, patch_ref):
    """One (batch, L-tile) block per grid step.

    x_ref     : (1, Cin, TL)     input tile, NCL layout (L on lanes)
    halo_ref  : (1, 1, Cin, 2)   [..., 0] = x[:, tile_start-1] (or 0)
                                 [..., 1] = x[:, tile_end]     (or 0)
    w_ref     : (Cout, 3*Cin)    im2col weight: w[:, k*Cin+ci] = W[:, ci, k]
    scale_ref : (Cout, 1)        folded BN scale = gamma / sqrt(var + eps)
    bias_ref  : (Cout, 1)        folded BN bias  = beta - mean * scale
    o_ref     : (1, Cout, TL)
    patch_ref : (3*Cin, TL)      VMEM scratch holding the shifted im2col patch
    """
    cin = x_ref.shape[1]
    tl = x_ref.shape[2]

    x = x_ref[0]                          # (Cin, TL)
    halo = halo_ref[0, 0]                 # (Cin, 2)

    # Center tap (k=1): x[:, l]
    patch_ref[cin:2 * cin, :] = x
    # Left tap (k=0): x[:, l-1]   (column 0 comes from the left halo)
    patch_ref[0:cin, 1:tl] = x[:, 0:tl - 1]
    patch_ref[0:cin, 0:1] = halo[:, 0:1]
    # Right tap (k=2): x[:, l+1]  (last column comes from the right halo)
    patch_ref[2 * cin:3 * cin, 0:tl - 1] = x[:, 1:tl]
    patch_ref[2 * cin:3 * cin, tl - 1:tl] = halo[:, 1:2]

    # Single fused matmul over K = 3*Cin on the MXU, f32 accumulation.
    acc = jnp.dot(w_ref[...], patch_ref[...],
                  preferred_element_type=jnp.float32)      # (Cout, TL)

    # Folded BatchNorm (affine) + ReLU epilogue in f32; lane-dense store.
    out = acc * scale_ref[...] + bias_ref[...]
    o_ref[0] = jnp.maximum(out, 0.0).astype(o_ref.dtype)


def _choose_l_tile(L, Cin, Cout, in_itemsize,
                   vmem_budget_bytes=16 * 1024 * 1024):
    """Largest lane-aligned L tile that divides L and fits the VMEM budget.

    Sized conservatively for v7x (64 MiB physical / 32 MiB scoped VMEM):
    double-buffered input/output blocks plus the im2col scratch must stay
    well under the scoped limit so 2-deep pipelining survives.
    """
    for tl in (4096, 2048, 1024, 512, 256, 128):
        if L % tl != 0:
            continue
        per_step = (2 * Cin * tl * in_itemsize      # x block, double-buffered
                    + 2 * Cout * tl * 4             # out block, double-buffered
                    + 3 * Cin * tl * in_itemsize    # im2col patch scratch
                    + Cout * tl * 4)                # f32 accumulator
        if per_step <= vmem_budget_bytes:
            return tl
    # Small (or awkwardly sized) L: one tile spanning the whole length.
    # TODO(synk): add remainder-tile masking so huge non-128-divisible L still tiles.
    return L


def residual_adaptor(x_ncl, weight, gamma, beta, running_mean, running_var,
                     eps=1e-5, compute_dtype=None):
    """x_ncl : (N, Cin, L)  PyTorch Conv1d layout, kept end-to-end.
    weight  : (Cout, Cin, 3) PyTorch Conv1d weight.
    Returns (N, Cout, L) with dtype of x_ncl.

    compute_dtype: optional MXU input dtype (e.g. jnp.bfloat16 halves HBM
    bytes for the dominant x stream; accumulation + BN/ReLU stay f32).
    """
    N, Cin, L = x_ncl.shape
    Cout = weight.shape[0]
    out_dtype = x_ncl.dtype
    if compute_dtype is None:
        compute_dtype = x_ncl.dtype
    compute_dtype = jnp.dtype(compute_dtype)

    # --- tiny wrapper-side prep (no full-tensor HBM round trips) ----------
    # Folded BatchNorm (inference mode, running statistics).
    scale = (gamma / jnp.sqrt(running_var + eps)).astype(jnp.float32)
    bias = (beta - running_mean * scale).astype(jnp.float32)
    scale2 = scale.reshape(Cout, 1)
    bias2 = bias.reshape(Cout, 1)

    # im2col'ed weight: w_flat[co, k*Cin + ci] = weight[co, ci, k]
    w_flat = jnp.transpose(weight, (0, 2, 1)).reshape(Cout, 3 * Cin)
    w_flat = w_flat.astype(compute_dtype)

    x = x_ncl.astype(compute_dtype)

    TL = _choose_l_tile(L, Cin, Cout, compute_dtype.itemsize)
    num_tiles = L // TL

    # Conv halo columns for every L tile (size = 2/TL of x -> negligible):
    #   halo[n, j, :, 0] = x[n, :, j*TL - 1]   (zero for the first tile)
    #   halo[n, j, :, 1] = x[n, :, (j+1)*TL]   (zero for the last tile)
    zcol = jnp.zeros((N, Cin, 1), compute_dtype)
    if num_tiles > 1:
        left_cols = jnp.concatenate(
            [zcol, x[:, :, TL - 1:L - 1:TL]], axis=-1)        # (N, Cin, nt)
        right_cols = jnp.concatenate(
            [x[:, :, TL:L:TL], zcol], axis=-1)                # (N, Cin, nt)
    else:
        left_cols = zcol
        right_cols = zcol
    halo = jnp.stack([left_cols, right_cols], axis=-1)        # (N, Cin, nt, 2)
    halo = jnp.transpose(halo, (0, 2, 1, 3))                  # (N, nt, Cin, 2)

    cost = pl.CostEstimate(
        flops=2 * 3 * N * L * Cin * Cout,
        transcendentals=0,
        bytes_accessed=(N * L * Cin * compute_dtype.itemsize
                        + N * L * Cout * jnp.dtype(out_dtype).itemsize
                        + 3 * Cin * Cout * compute_dtype.itemsize))

    out = pl.pallas_call(
        _residual_adaptor_kernel,
        out_shape=jax.ShapeDtypeStruct((N, Cout, L), out_dtype),
        grid_spec=pltpu.PrefetchScalarGridSpec(
            num_scalar_prefetch=0,
            grid=(N, num_tiles),
            in_specs=[
                pl.BlockSpec((1, Cin, TL), lambda n, j: (n, 0, j)),
                pl.BlockSpec((1, 1, Cin, 2), lambda n, j: (n, j, 0, 0)),
                pl.BlockSpec((Cout, 3 * Cin), lambda n, j: (0, 0)),
                pl.BlockSpec((Cout, 1), lambda n, j: (0, 0)),
                pl.BlockSpec((Cout, 1), lambda n, j: (0, 0)),
            ],
            out_specs=pl.BlockSpec((1, Cout, TL), lambda n, j: (n, 0, j)),
            scratch_shapes=[pltpu.VMEM((3 * Cin, TL), compute_dtype)],
        ),
        compiler_params=pltpu.CompilerParams(
            dimension_semantics=("parallel", "parallel"),
            vmem_limit_bytes=32 * 1024 * 1024),
        cost_estimate=cost,
    )(x, halo, w_flat, scale2, bias2)

    return out


def _reference(x_ncl, weight, gamma, beta, running_mean, running_var,
               eps=1e-5):
    """Pure-JAX reference matching PyTorch inference-mode semantics."""
    out = jax.lax.conv_general_dilated(
        x_ncl, weight, window_strides=(1,), padding=((1, 1),),
        dimension_numbers=('NCH', 'OIH', 'NCH'))
    scale = gamma / jnp.sqrt(running_var + eps)
    bias = beta - running_mean * scale
    out = out * scale[None, :, None] + bias[None, :, None]
    return jnp.maximum(out, 0.0)


def _make_inputs(key, N, Cin, Cout, L):
    k_x, k_w, k_g, k_b, k_m, k_v = jax.random.split(key, 6)
    x = jax.random.normal(k_x, (N, Cin, L), dtype=jnp.float32)
    weight = 0.1 * jax.random.normal(k_w, (Cout, Cin, 3), dtype=jnp.float32)
    gamma = 1.0 + 0.1 * jax.random.normal(k_g, (Cout,), dtype=jnp.float32)
    beta = 0.1 * jax.random.normal(k_b, (Cout,), dtype=jnp.float32)
    running_mean = 0.1 * jax.random.normal(k_m, (Cout,), dtype=jnp.float32)
    running_var = jax.random.uniform(k_v, (Cout,), dtype=jnp.float32,
                                     minval=0.5, maxval=1.5)
    return x, weight, gamma, beta, running_mean, running_var


if __name__ == "__main__":
    key = jax.random.PRNGKey(0)
    k1, k2 = jax.random.split(key)

    # Case 1: tiny shapes consistent with the module (single L tile).
    N, INPLANES, PLANES, L = 2, 4, 8, 16
    args1 = _make_inputs(k1, N, INPLANES, PLANES, L)
    out1 = jax.block_until_ready(residual_adaptor(*args1))
    ref1 = _reference(*args1)
    assert out1.shape == (N, PLANES, L), out1.shape
    assert jnp.allclose(out1, ref1, atol=1e-5, rtol=1e-5), \
        float(jnp.max(jnp.abs(out1 - ref1)))

    # Case 2: still small, but long enough to exercise the tiled-L + halo path
    # (L = 256 -> TL = 128, num_tiles = 2).
    args2 = _make_inputs(k2, 1, INPLANES, PLANES, 256)
    out2 = jax.block_until_ready(residual_adaptor(*args2))
    ref2 = _reference(*args2)
    assert out2.shape == (1, PLANES, 256), out2.shape
    assert jnp.allclose(out2, ref2, atol=1e-5, rtol=1e-5), \
        float(jnp.max(jnp.abs(out2 - ref2)))

    print("KERNEL_OK")
</pallas_src>

<mosaic_0001>
module attributes {stable_mosaic.version = 11 : i64} {
  func.func @_residual_adaptor_kernel(%arg0: i32, %arg1: i32, %arg2: memref<1x4x16xf32, #tpu.memory_space<vmem>>, %arg3: memref<1x1x4x2xf32, #tpu.memory_space<vmem>>, %arg4: memref<8x12xf32, #tpu.memory_space<vmem>>, %arg5: memref<8x1xf32, #tpu.memory_space<vmem>>, %arg6: memref<8x1xf32, #tpu.memory_space<vmem>>, %arg7: memref<1x8x16xf32, #tpu.memory_space<vmem>>, %arg8: memref<12x16xf32, #tpu.memory_space<vmem>>) attributes {dimension_semantics = [#tpu.dimension_semantics<parallel>, #tpu.dimension_semantics<parallel>], iteration_bounds = array<i64: 2, 1>, scalar_prefetch = 0 : i64, scratch_operands = 1 : i64, tpu.core_type = #tpu.core_type<tc>, window_params = [{transform_indices = @transform_0, window_bounds = array<i64: 1, 4, 16>}, {transform_indices = @transform_1, window_bounds = array<i64: 1, 1, 4, 2>}, {pipeline_mode = #tpu.pipeline_mode<synchronous>, transform_indices = @transform_2, window_bounds = array<i64: 8, 12>}, {pipeline_mode = #tpu.pipeline_mode<synchronous>, transform_indices = @transform_3, window_bounds = array<i64: 8, 1>}, {pipeline_mode = #tpu.pipeline_mode<synchronous>, transform_indices = @transform_4, window_bounds = array<i64: 8, 1>}, {transform_indices = @transform_5, window_bounds = array<i64: 1, 8, 16>}]} {
    %c0 = arith.constant 0 : index
    %c0_0 = arith.constant 0 : index
    %c0_1 = arith.constant 0 : index
    %0 = vector.load %arg2[%c0, %c0_0, %c0_1] : memref<1x4x16xf32, #tpu.memory_space<vmem>>, vector<1x4x16xf32>
    %1 = vector.shape_cast %0 : vector<1x4x16xf32> to vector<4x16xf32>
    %c0_2 = arith.constant 0 : index
    %c0_3 = arith.constant 0 : index
    %c0_4 = arith.constant 0 : index
    %c0_5 = arith.constant 0 : index
    %2 = vector.load %arg3[%c0_2, %c0_3, %c0_4, %c0_5] : memref<1x1x4x2xf32, #tpu.memory_space<vmem>>, vector<1x1x4x2xf32>
    %3 = vector.shape_cast %2 : vector<1x1x4x2xf32> to vector<4x2xf32>
    %c4 = arith.constant 4 : index
    %c0_6 = arith.constant 0 : index
    %4 = vector.load %arg8[%c4, %c0_6] : memref<12x16xf32, #tpu.memory_space<vmem>>, vector<4x16xf32>
    tpu.vector_store %arg8[%c4, %c0_6], %1 {strides = array<i32>} : memref<12x16xf32, #tpu.memory_space<vmem>>, vector<4x16xf32>,
    %5 = vector.extract_strided_slice %1 {offsets = [0, 0], sizes = [4, 15], strides = [1, 1]} : vector<4x16xf32> to vector<4x15xf32>
    %c0_7 = arith.constant 0 : index
    %c1 = arith.constant 1 : index
    %6 = vector.load %arg8[%c0_7, %c1] : memref<12x16xf32, #tpu.memory_space<vmem>>, vector<4x15xf32>
    tpu.vector_store %arg8[%c0_7, %c1], %5 {strides = array<i32>} : memref<12x16xf32, #tpu.memory_space<vmem>>, vector<4x15xf32>,
    %7 = vector.extract_strided_slice %3 {offsets = [0, 0], sizes = [4, 1], strides = [1, 1]} : vector<4x2xf32> to vector<4x1xf32>
    %c0_8 = arith.constant 0 : index
    %c0_9 = arith.constant 0 : index
    %8 = vector.load %arg8[%c0_8, %c0_9] : memref<12x16xf32, #tpu.memory_space<vmem>>, vector<4x1xf32>
    tpu.vector_store %arg8[%c0_8, %c0_9], %7 {strides = array<i32>} : memref<12x16xf32, #tpu.memory_space<vmem>>, vector<4x1xf32>,
    %9 = vector.extract_strided_slice %1 {offsets = [0, 1], sizes = [4, 15], strides = [1, 1]} : vector<4x16xf32> to vector<4x15xf32>
    %c8 = arith.constant 8 : index
    %c0_10 = arith.constant 0 : index
    %10 = vector.load %arg8[%c8, %c0_10] : memref<12x16xf32, #tpu.memory_space<vmem>>, vector<4x15xf32>
    tpu.vector_store %arg8[%c8, %c0_10], %9 {strides = array<i32>} : memref<12x16xf32, #tpu.memory_space<vmem>>, vector<4x15xf32>,
    %11 = vector.extract_strided_slice %3 {offsets = [0, 1], sizes = [4, 1], strides = [1, 1]} : vector<4x2xf32> to vector<4x1xf32>
    %c8_11 = arith.constant 8 : index
    %c15 = arith.constant 15 : index
    %12 = vector.load %arg8[%c8_11, %c15] : memref<12x16xf32, #tpu.memory_space<vmem>>, vector<4x1xf32>
    tpu.vector_store %arg8[%c8_11, %c15], %11 {strides = array<i32>} : memref<12x16xf32, #tpu.memory_space<vmem>>, vector<4x1xf32>,
    %c0_12 = arith.constant 0 : index
    %c0_13 = arith.constant 0 : index
    %13 = vector.load %arg4[%c0_12, %c0_13] : memref<8x12xf32, #tpu.memory_space<vmem>>, vector<8x12xf32>
    %c0_14 = arith.constant 0 : index
    %c0_15 = arith.constant 0 : index
    %14 = vector.load %arg8[%c0_14, %c0_15] : memref<12x16xf32, #tpu.memory_space<vmem>>, vector<12x16xf32>
    %cst = arith.constant dense<0.000000e+00> : vector<8x16xf32>
    %15 = tpu.matmul %13, %14, %cst {dimension_numbers = #tpu.dot_dimension_numbers<[1], [0], [0], [1], [0, 0, 1, 1], [], []>} : vector<8x12xf32>, vector<12x16xf32>, vector<8x16xf32> -> vector<8x16xf32>
    %c0_16 = arith.constant 0 : index
    %c0_17 = arith.constant 0 : index
    %16 = vector.load %arg5[%c0_16, %c0_17] : memref<8x1xf32, #tpu.memory_space<vmem>>, vector<8x1xf32>
    %17 = vector.broadcast %16 : vector<8x1xf32> to vector<8x16xf32>
    %18 = arith.mulf %15, %17 : vector<8x16xf32>
    %c0_18 = arith.constant 0 : index
    %c0_19 = arith.constant 0 : index
    %19 = vector.load %arg6[%c0_18, %c0_19] : memref<8x1xf32, #tpu.memory_space<vmem>>, vector<8x1xf32>
    %20 = vector.broadcast %19 : vector<8x1xf32> to vector<8x16xf32>
    %21 = arith.addf %18, %20 : vector<8x16xf32>
    %cst_20 = arith.constant 0.000000e+00 : f32
    %22 = vector.broadcast %cst_20 : f32 to vector<8x16xf32>
    %23 = arith.maximumf %21, %22 : vector<8x16xf32>
    %c0_21 = arith.constant 0 : index
    %c0_22 = arith.constant 0 : index
    %c0_23 = arith.constant 0 : index
    %24 = vector.load %arg7[%c0_21, %c0_22, %c0_23] : memref<1x8x16xf32, #tpu.memory_space<vmem>>, vector<1x8x16xf32>
    %25 = vector.shape_cast %24 : vector<1x8x16xf32> to vector<8x16xf32>
    %26 = vector.shape_cast %23 : vector<8x16xf32> to vector<1x8x16xf32>
    tpu.vector_store %arg7[%c0_21, %c0_22, %c0_23], %26 {strides = array<i32>} : memref<1x8x16xf32, #tpu.memory_space<vmem>>, vector<1x8x16xf32>,
    return
  }
  func.func @transform_0(%arg0: i32, %arg1: i32) -> (i32, i32, i32) {
    %c0_i32 = arith.constant 0 : i32
    %c0_i32_0 = arith.constant 0 : i32
    return %arg0, %c0_i32, %arg1 : i32, i32, i32
  }
  func.func @transform_1(%arg0: i32, %arg1: i32) -> (i32, i32, i32, i32) {
    %c0_i32 = arith.constant 0 : i32
    %c0_i32_0 = arith.constant 0 : i32
    %c0_i32_1 = arith.constant 0 : i32
    return %arg0, %arg1, %c0_i32, %c0_i32_0 : i32, i32, i32, i32
  }
  func.func @transform_2(%arg0: i32, %arg1: i32) -> (i32, i32) {
    %c0_i32 = arith.constant 0 : i32
    %c0_i32_0 = arith.constant 0 : i32
    %c0_i32_1 = arith.constant 0 : i32
    return %c0_i32, %c0_i32_0 : i32, i32
  }
  func.func @transform_3(%arg0: i32, %arg1: i32) -> (i32, i32) {
    %c0_i32 = arith.constant 0 : i32
    %c0_i32_0 = arith.constant 0 : i32
    %c0_i32_1 = arith.constant 0 : i32
    return %c0_i32, %c0_i32_0 : i32, i32
  }
  func.func @transform_4(%arg0: i32, %arg1: i32) -> (i32, i32) {
    %c0_i32 = arith.constant 0 : i32
    %c0_i32_0 = arith.constant 0 : i32
    %c0_i32_1 = arith.constant 0 : i32
    return %c0_i32, %c0_i32_0 : i32, i32
  }
  func.func @transform_5(%arg0: i32, %arg1: i32) -> (i32, i32, i32) {
    %c0_i32 = arith.constant 0 : i32
    %c0_i32_0 = arith.constant 0 : i32
    return %arg0, %c0_i32, %arg1 : i32, i32, i32
  }
}

</mosaic_0001>

<llo_original>
// kernel: tpu_custom_call.1
$region0: #{tpu_custom_call.1}
  #allocation0 [shape = 'u32[]', space=smem, size = 0x4, offset = 0x4, fixed_abs, tag = 'smem constant byte address 0x4 - core index']
  #allocation1 [shape = 'u32[144,128]{1,0:T(1,128)}', space=vmem, size = 0x12000, scoped, tag = 'internal scratch']
  #allocation2 [shape = 'f32[12,16]{1,0:T(8,128)}', space=vmem, size = 0x2000, scoped, tag = 'scratch operand']
  %s0 = inlined_call_operand.vmem [shape: f32[2,4,16], index: 0, kind: input, shape index: {}]
  %s1 = inlined_call_operand.vmem [shape: f32[2,1,4,2], index: 1, kind: input, shape index: {}]
  %s2 = inlined_call_operand.vmem [shape: f32[8,12], index: 2, kind: input, shape index: {}]
  %s3 = inlined_call_operand.vmem [shape: f32[8,1], index: 3, kind: input, shape index: {}]
  %s4 = inlined_call_operand.vmem [shape: f32[8,1], index: 4, kind: input, shape index: {}]
  %s5 = inlined_call_operand.hbm [shape: f32[2,8,16], index: 5, kind: output, shape index: {}]
  %s6 = sld [smem:[#allocation0]]
  $region53: #{tpu_custom_call.1} parent=0
    _
  %s8 = ssub.s32 1, %s6
  %s9 = scalar_select 0, %s8, %s6
  $region1: #{tpu_custom_call.1} parent=0
    #allocation3 [shape = 'u8[8192]{0}', space=vmem, size = 0x2000, scoped, tag = 'output window, operand 0']
    #allocation4 [shape = 's32[2]{0}', space=sflag, size = 0x8, scoped, tag = 'scoped memory for tpu_custom_call.1']
    %10 = vsyncpa [#allocation4], 0
    %s11 = scalar_lea.sflag [#allocation4], 1
    %12 = vsyncpa %s11, 0
    loop: start=0, step=1, limit=4
    $region2: #{tpu_custom_call.1} parent=1 // loop_pre_header
      _
    $region3: #{tpu_custom_call.1} parent=1 // loop_header
      %s14 = sphi 0, %s18
      %p15 = scmp.ge.s32.totalorder %s14, 4
      %s21 = sphi 0, %s33
      %s22 = sphi 0, %s29
      %s23 = sphi 0, %s21
      %s24 = sphi 0, %s22
      %s25 = sphi 0, %s23
      %s26 = sphi 0, %s24
      %s38 = sphi 0, %s40
      %s41 = sphi 0, %s38
      %s42 = sphi 0, %s41
      %s58 = sphi 0, %s42
      %s66 = sphi 0, %s68
      %s69 = sphi 0, %s66
      %s70 = sphi 0, %s69
      %s86 = sphi 0, %s70
      %s90 = sphi 0, %s90
      %s92 = sphi 0, %s90
      %s93 = sphi 0, %s92
      %s107 = sphi 0, %s93
      %s111 = sphi 0, %s111
      %s113 = sphi 0, %s111
      %s114 = sphi 0, %s113
      %s128 = sphi 0, %s114
      %s132 = sphi 0, %s132
      %s134 = sphi 0, %s132
      %s135 = sphi 0, %s134
      %s149 = sphi 0, %s135
      %s157 = sphi 0, %s159
      %s160 = sphi 0, %s157
      %s161 = sphi 0, %s160
      %s177 = sphi 0, %s161
    $region4: #{tpu_custom_call.1} parent=1 // loop_header_branch
      %17 = sbr.rel (%p15) target = $region8
    $region5: #{tpu_custom_call.1} parent=1 // loop_body
      %s19 = ssub.s32 %s14, 1
      %s20 = ssub.s32 %s14, 2
      %s27 = sadd.s32 1, %s22
      %p28 = scmp.ge.s32.totalorder %s27, 1
      %s29 = scalar_select %p28, 0, %s27
      %s30 = sadd.s32 1, %s21
      %s31 = scalar_select %p28, %s30, %s21
      %p32 = scmp.ge.s32.totalorder %s31, 2
      %s33 = scalar_select %p32, 0, %s31
      %s34 = ssub.s32 %s21, %s33
      %s35 = ssub.s32 %s22, %s29
      %s36 = sor.u32 %s34, %s35
      %p37 = scmp.eq.s32.totalorder %s36, 0
      %s39 = sadd.s32 %s38, 1
      %s40 = scalar_select %p37, %s38, %s39
      %p43 = pneg %p37
      %p44 = scmp.eq.s32.totalorder %s14, 1
      %p45 = por %p43, %p44
      %p46 = scmp.ne.s32.totalorder %s38, %s41
      %p47 = scmp.eq.s32.totalorder %s14, 0
      %p48 = por %p46, %p47
      %p49 = scmp.ne.s32.totalorder %s38, %s41
      %p50 = scmp.eq.s32.totalorder %s19, 1
      %p51 = por %p49, %p50
      %p52 = scmp.ne.s32.totalorder %s41, %s42
      %p53 = scmp.eq.s32.totalorder %s19, 0
      %p54 = por %p52, %p53
      %p55 = scmp.ne.s32.totalorder %s41, %s42
      %p56 = scmp.eq.s32.totalorder %s20, 1
      %p57 = por %p55, %p56
      %p59 = scmp.ne.s32.totalorder %s42, %s58
      %p60 = scmp.eq.s32.totalorder %s20, 0
      %p61 = por %p59, %p60
      %s62 = ssub.s32 %s21, %s33
      %s63 = ssub.s32 %s22, %s29
      %s64 = sor.u32 %s62, %s63
      %p65 = scmp.eq.s32.totalorder %s64, 0
      %s67 = sadd.s32 %s66, 1
      %s68 = scalar_select %p65, %s66, %s67
      %p71 = pneg %p65
      %p72 = scmp.eq.s32.totalorder %s14, 1
      %p73 = por %p71, %p72
      %p74 = scmp.ne.s32.totalorder %s66, %s69
      %p75 = scmp.eq.s32.totalorder %s14, 0
      %p76 = por %p74, %p75
      %p77 = scmp.ne.s32.totalorder %s66, %s69
      %p78 = scmp.eq.s32.totalorder %s19, 1
      %p79 = por %p77, %p78
      %p80 = scmp.ne.s32.totalorder %s69, %s70
      %p81 = scmp.eq.s32.totalorder %s19, 0
      %p82 = por %p80, %p81
      %p83 = scmp.ne.s32.totalorder %s69, %s70
      %p84 = scmp.eq.s32.totalorder %s20, 1
      %p85 = por %p83, %p84
      %p87 = scmp.ne.s32.totalorder %s70, %s86
      %p88 = scmp.eq.s32.totalorder %s20, 0
      %p89 = por %p87, %p88
      %s91 = sadd.s32 %s90, 1
      %p94 = scmp.eq.s32.totalorder %s14, 1
      %p95 = scmp.ne.s32.totalorder %s90, %s92
      %p96 = scmp.eq.s32.totalorder %s14, 0
      %p97 = por %p95, %p96
      %p98 = scmp.ne.s32.totalorder %s90, %s92
      %p99 = scmp.eq.s32.totalorder %s19, 1
      %p100 = por %p98, %p99
      %p101 = scmp.ne.s32.totalorder %s92, %s93
      %p102 = scmp.eq.s32.totalorder %s19, 0
      %p103 = por %p101, %p102
      %p104 = scmp.ne.s32.totalorder %s92, %s93
      %p105 = scmp.eq.s32.totalorder %s20, 1
      %p106 = por %p104, %p105
      %p108 = scmp.ne.s32.totalorder %s93, %s107
      %p109 = scmp.eq.s32.totalorder %s20, 0
      %p110 = por %p108, %p109
      %s112 = sadd.s32 %s111, 1
      %p115 = scmp.eq.s32.totalorder %s14, 1
      %p116 = scmp.ne.s32.totalorder %s111, %s113
      %p117 = scmp.eq.s32.totalorder %s14, 0
      %p118 = por %p116, %p117
      %p119 = scmp.ne.s32.totalorder %s111, %s113
      %p120 = scmp.eq.s32.totalorder %s19, 1
      %p121 = por %p119, %p120
      %p122 = scmp.ne.s32.totalorder %s113, %s114
      %p123 = scmp.eq.s32.totalorder %s19, 0
      %p124 = por %p122, %p123
      %p125 = scmp.ne.s32.totalorder %s113, %s114
      %p126 = scmp.eq.s32.totalorder %s20, 1
      %p127 = por %p125, %p126
      %p129 = scmp.ne.s32.totalorder %s114, %s128
      %p130 = scmp.eq.s32.totalorder %s20, 0
      %p131 = por %p129, %p130
      %s133 = sadd.s32 %s132, 1
      %p136 = scmp.eq.s32.totalorder %s14, 1
      %p137 = scmp.ne.s32.totalorder %s132, %s134
      %p138 = scmp.eq.s32.totalorder %s14, 0
      %p139 = por %p137, %p138
      %p140 = scmp.ne.s32.totalorder %s132, %s134
      %p141 = scmp.eq.s32.totalorder %s19, 1
      %p142 = por %p140, %p141
      %p143 = scmp.ne.s32.totalorder %s134, %s135
      %p144 = scmp.eq.s32.totalorder %s19, 0
      %p145 = por %p143, %p144
      %p146 = scmp.ne.s32.totalorder %s134, %s135
      %p147 = scmp.eq.s32.totalorder %s20, 1
      %p148 = por %p146, %p147
      %p150 = scmp.ne.s32.totalorder %s135, %s149
      %p151 = scmp.eq.s32.totalorder %s20, 0
      %p152 = por %p150, %p151
      %s153 = ssub.s32 %s21, %s33
      %s154 = ssub.s32 %s22, %s29
      %s155 = sor.u32 %s153, %s154
      %p156 = scmp.eq.s32.totalorder %s155, 0
      %s158 = sadd.s32 %s157, 1
      %s159 = scalar_select %p156, %s157, %s158
      %p162 = pneg %p156
      %p163 = scmp.eq.s32.totalorder %s14, 1
      %p164 = por %p162, %p163
      %p165 = scmp.ne.s32.totalorder %s157, %s160
      %p166 = scmp.eq.s32.totalorder %s14, 0
      %p167 = por %p165, %p166
      %p168 = scmp.ne.s32.totalorder %s157, %s160
      %p169 = scmp.eq.s32.totalorder %s19, 1
      %p170 = por %p168, %p169
      %p171 = scmp.ne.s32.totalorder %s160, %s161
      %p172 = scmp.eq.s32.totalorder %s19, 0
      %p173 = por %p171, %p172
      %p174 = scmp.ne.s32.totalorder %s160, %s161
      %p175 = scmp.eq.s32.totalorder %s20, 1
      %p176 = por %p174, %p175
      %p178 = scmp.ne.s32.totalorder %s161, %s177
      %p179 = scmp.eq.s32.totalorder %s20, 0
      %p180 = por %p178, %p179
      %p181 = scmp.le.s32.totalorder 1, %s14
      %p182 = scmp.lt.s32.totalorder %s14, 3
      %p183 = pnand %p181, %p182
      %p184 = pneg %p183
      // Predicated region
      $region9: #{tpu_custom_call.1} parent=5 // pred_check
        _
      $region10: #{tpu_custom_call.1} parent=5 // pred_check_branch
        %186 = sbr.rel (%p183) target = $region12
      $region11: #{tpu_custom_call.1} parent=5 // pred_region
        %s187 = ssub.s32 %s14, 1
        // Predicated region
        $region13: #{tpu_custom_call.1} parent=11 // pred_check
          %p188 = pneg %p103
        $region14: #{tpu_custom_call.1} parent=11 // pred_check_branch
          %190 = sbr.rel (%p188) target = $region16
        $region15: #{tpu_custom_call.1} parent=11 // pred_region
          _
        $region16: #{tpu_custom_call.1} parent=11 // pred_fallthru
          _
        // Predicated region
        $region17: #{tpu_custom_call.1} parent=11 // pred_check
          %p191 = pneg %p124
        $region18: #{tpu_custom_call.1} parent=11 // pred_check_branch
          %193 = sbr.rel (%p191) target = $region20
        $region19: #{tpu_custom_call.1} parent=11 // pred_region
          _
        $region20: #{tpu_custom_call.1} parent=11 // pred_fallthru
          _
        // Predicated region
        $region21: #{tpu_custom_call.1} parent=11 // pred_check
          %p194 = pneg %p145
        $region22: #{tpu_custom_call.1} parent=11 // pred_check_branch
          %196 = sbr.rel (%p194) target = $region24
        $region23: #{tpu_custom_call.1} parent=11 // pred_region
          _
        $region24: #{tpu_custom_call.1} parent=11 // pred_fallthru
          _
      $region12: #{tpu_custom_call.1} parent=5 // pred_fallthru
        _
      %p197 = scmp.lt.s32.totalorder %s14, 2
      // Predicated region
      $region25: #{tpu_custom_call.1} parent=5 // pred_check
        %p198 = pneg %p197
      $region26: #{tpu_custom_call.1} parent=5 // pred_check_branch
        %200 = sbr.rel (%p198) target = $region28
      $region27: #{tpu_custom_call.1} parent=5 // pred_region
        // Predicated region
        $region29: #{tpu_custom_call.1} parent=27 // pred_check
          %p201 = pneg %p48
        $region30: #{tpu_custom_call.1} parent=27 // pred_check_branch
          %203 = sbr.rel (%p201) target = $region32
        $region31: #{tpu_custom_call.1} parent=27 // pred_region
          %p204 = scmp.lt.s32.totalorder %s21, 1
          %s205 = scalar_select %p204, %s21, 1
          %p206 = scmp.lt.s32.totalorder %s22, 0
          %s207 = scalar_select %p206, %s22, 0
          %s208 = sadd.s32 %s207, %s205
          %s209 = smul.addr %s208, 4
          %s210 = scalar_lea.vmem %s0, %s209
        $region32: #{tpu_custom_call.1} parent=27 // pred_fallthru
          _
        // Predicated region
        $region33: #{tpu_custom_call.1} parent=27 // pred_check
          %p211 = pneg %p76
        $region34: #{tpu_custom_call.1} parent=27 // pred_check_branch
          %213 = sbr.rel (%p211) target = $region36
        $region35: #{tpu_custom_call.1} parent=27 // pred_region
          %p214 = scmp.lt.s32.totalorder %s21, 1
          %s215 = scalar_select %p214, %s21, 1
          %p216 = scmp.lt.s32.totalorder %s22, 0
          %s217 = scalar_select %p216, %s22, 0
          %s218 = sadd.s32 %s217, %s215
          %s219 = smul.addr %s218, 4
          %s220 = scalar_lea.vmem %s1, %s219
        $region36: #{tpu_custom_call.1} parent=27 // pred_fallthru
          _
      $region28: #{tpu_custom_call.1} parent=5 // pred_fallthru
        _
      %p221 = scmp.le.s32.totalorder 1, %s14
      %p222 = scmp.lt.s32.totalorder %s14, 3
      %p223 = pnand %p221, %p222
      %p224 = pneg %p223
      // Predicated region
      $region37: #{tpu_custom_call.1} parent=5 // pred_check
        _
      $region38: #{tpu_custom_call.1} parent=5 // pred_check_branch
        %226 = sbr.rel (%p223) target = $region40
      $region39: #{tpu_custom_call.1} parent=5 // pred_region
        %s227 = ssub.s32 %s14, 1
        %p228 = scmp.lt.s32.totalorder %s23, 1
        %s229 = scalar_select %p228, %s23, 1
        %p230 = scmp.lt.s32.totalorder %s24, 0
        %s231 = scalar_select %p230, %s24, 0
        %s232 = sadd.s32 %s231, %s229
        %s233 = smul.addr %s232, 4
        %s234 = scalar_lea.vmem %s0, %s233
        %p235 = pneg %p54
        %p236 = pneg %p51
        %p237 = scmp.lt.s32.totalorder %s23, 1
        %s238 = scalar_select %p237, %s23, 1
        %p239 = scmp.lt.s32.totalorder %s24, 0
        %s240 = scalar_select %p239, %s24, 0
        %s241 = sadd.s32 %s240, %s238
        %s242 = smul.addr %s241, 4
        %s243 = scalar_lea.vmem %s1, %s242
        %p244 = pneg %p82
        %p245 = pneg %p79
        %p246 = pneg %p103
        %p247 = pneg %p100
        %p248 = pneg %p124
        %p249 = pneg %p121
        %p250 = pneg %p145
        %p251 = pneg %p142
        %p252 = pneg %p173
        %p253 = pneg %p170
        %s254 = sand.u32 %s160, 1
        %s255 = scalar_lea.sflag [#allocation4], %s254
        %s256 = sand.u32 %s160, 1
        %s257 = smul.addr %s256, 8
        %s258 = scalar_lea.vmem [#allocation3], %s257
        %p259 = scmp.lt.s32.totalorder %s23, 1
        %s260 = scalar_select %p259, %s23, 1
        %p261 = scmp.lt.s32.totalorder %s24, 0
        %s262 = scalar_select %p261, %s24, 0
        %s263 = sadd.s32 %s262, %s260
        %s264 = smul.addr %s263, 4
        %s265 = scalar_lea.vmem %s0, %s264
        %p266 = scmp.lt.s32.totalorder %s23, 1
        %s267 = scalar_select %p266, %s23, 1
        %p268 = scmp.lt.s32.totalorder %s24, 0
        %s269 = scalar_select %p268, %s24, 0
        %s270 = sadd.s32 %s269, %s267
        %s271 = smul.addr %s270, 4
        %s272 = scalar_lea.vmem %s1, %s271
        %v273 = vld [vmem:[%s265] sm:$0xf]
        %v274 = vld [vmem:[%s272] sm:$0xf]
        %vm275 = vcmask 125952
        %276 = vst.msk [vmem:[#allocation2 + $0x4] sm:$0xf] %vm275, %v273
        %278 = vrot.lane.b32.xlu0 %v273, 1
        %v279 = vpop.permute.xlu0 %278
        %vm281 = vcmask 125960
        %282 = vst.msk [vmem:[#allocation2] sm:$0xf] %vm281, %v279
        %vm283 = vcmask 3072
        %284 = vst.msk [vmem:[#allocation2] sm:$0xf] %vm283, %v274
        %285 = vrot.lane.b32.xlu0 %v273, 127
        %v286 = vpop.permute.xlu0 %285
        %vm288 = vcmask 117760
        %289 = vst.msk [vmem:[#allocation2 + $0x8] sm:$0xf] %vm288, %v286
        %291 = vrot.lane.b32.xlu0 %v274, 14
        %v292 = vpop.permute.xlu0 %291
        %vm294 = vcmask 126072
        %295 = vst.msk [vmem:[#allocation2 + $0x8] sm:$0xf] %vm294, %v292
        %v296 = vld [vmem:[%s2] sm:$0xff]
        %v297 = vld [vmem:[#allocation2] sm:$0xff]
        %v298 = vld [vmem:[#allocation2 + $0x8] sm:$0xf]
        %vm299 = vcmask 97280
        %v301 = vsel %vm299, %v296, 0
        %vm303 = vcmask 1043456
        %v305 = vsel %vm303, %v298, 0
        %307 = vmatprep.subr.mxu0 0.0
        %308 = vmatpush1.msra.mxu0 %v297
        %309 = vmatprep.subr.mxu0 0.0
        %310 = vmatpush1.msra.mxu0 %v305
        %311 = vmatprep.subr.mxu0 0.0
        %312 = vmatpush1.msra.mxu0 0.0
        %313 = vmatprep.subr.mxu0 0.0
        %314 = vmatpush1.msra.mxu0 0.0
        %315 = vmatprep.subr.mxu0 0.0
        %316 = vmatpush1.msra.mxu0 0.0
        %317 = vmatprep.subr.mxu0 0.0
        %318 = vmatpush1.msra.mxu0 0.0
        %319 = vmatprep.subr.mxu0 0.0
        %320 = vmatpush1.msra.mxu0 0.0
        %321 = vmatprep.subr.mxu0 0.0
        %322 = vmatpush1.msra.mxu0 0.0
        %323 = vmatprep.subr.mxu0 0.0
        %324 = vmatpush1.msra.mxu0 0.0
        %325 = vmatprep.subr.mxu0 0.0
        %326 = vmatpush1.msra.mxu0 0.0
        %327 = vmatprep.subr.mxu0 0.0
        %328 = vmatpush1.msra.mxu0 0.0
        %329 = vmatprep.subr.mxu0 0.0
        %330 = vmatpush1.msra.mxu0 0.0
        %331 = vmatprep.subr.mxu0 0.0
        %332 = vmatpush1.msra.mxu0 0.0
        %333 = vmatprep.subr.mxu0 0.0
        %334 = vmatpush1.msra.mxu0 0.0
        %335 = vmatprep.subr.mxu0 0.0
        %336 = vmatpush1.msra.mxu0 0.0
        %337 = vmatprep.subr.mxu0 0.0
        %338 = vmatpush1.msra.mxu0 0.0
        %339 = vmatprep.subr.mxu0 0.0
        %340 = vmatpush1.msra.mxu0 0.0
        %341 = vmatprep.subr.mxu0 0.0
        %342 = vmatpush1.msra.mxu0 0.0
        %343 = vmatprep.subr.mxu0 0.0
        %344 = vmatpush1.msra.mxu0 0.0
        %345 = vmatprep.subr.mxu0 0.0
        %346 = vmatpush1.msra.mxu0 0.0
        %347 = vmatprep.subr.mxu0 0.0
        %348 = vmatpush1.msra.mxu0 0.0
        %349 = vmatprep.subr.mxu0 0.0
        %350 = vmatpush1.msra.mxu0 0.0
        %351 = vmatprep.subr.mxu0 0.0
        %352 = vmatpush1.msra.mxu0 0.0
        %353 = vmatprep.subr.mxu0 0.0
        %354 = vmatpush1.msra.mxu0 0.0
        %355 = vmatprep.subr.mxu0 0.0
        %356 = vmatpush1.msra.mxu0 0.0
        %357 = vmatprep.subr.mxu0 0.0
        %358 = vmatpush1.msra.mxu0 0.0
        %359 = vmatprep.subr.mxu0 0.0
        %360 = vmatpush1.msra.mxu0 0.0
        %361 = vmatprep.subr.mxu0 0.0
        %362 = vmatpush1.msra.mxu0 0.0
        %363 = vmatprep.subr.mxu0 0.0
        %364 = vmatpush1.msra.mxu0 0.0
        %365 = vmatprep.subr.mxu0 0.0
        %366 = vmatpush1.msra.mxu0 0.0
        %367 = vmatprep.subr.mxu0 0.0
        %368 = vmatpush1.msra.mxu0 0.0
        %369 = vmatprep.subr.mxu0 0.0
        %370 = vmatpush1.msra.mxu0 0.0
        %371 = vmatprep.mubr.f32.mxu0 0.0
        %372 = vmatmul.mubr.f32.gmra.mrb[0].mxu0 %v301
        %v373 = vpop.f32.mrb[0].mxu0
        %v374 = vadd.f32 0.0, %v373
        %v375 = vpop.f32.mrb[0].mxu0
        %376 = vdwg.mxu0
        %v377 = vld [vmem:[%s3] sm:$0xff]
        %379 = vset.pattern.permute.xlu0 0
        %380 = vperm.xlu0 %379, %v377
        %v381 = vpop.permute.xlu0 %380
        %v383 = vmul.f32 %v374, %v381
        %v384 = vld [vmem:[%s4] sm:$0xff]
        %386 = vset.pattern.permute.xlu0 0
        %387 = vperm.xlu0 %386, %v384
        %v388 = vpop.permute.xlu0 %387
        %v390 = vadd.f32 %v383, %v388
        %v391 = vmax.f32 %v390, 0.0
        %vm392 = vcmask 130048
        %393 = vst.msk [vmem:[%s258] sm:$0xff] %vm392, %v391
        %s394 = sand.u32 %s160, 1
        %s395 = scalar_lea.sflag [#allocation4], %s394
        %s396 = sand.u32 %s160, 1
        %s397 = smul.addr %s396, 8
        %s398 = scalar_lea.vmem [#allocation3], %s397
        // Predicated region
        $region41: #{tpu_custom_call.1} parent=39 // pred_check
          %p399 = pneg %p170
        $region42: #{tpu_custom_call.1} parent=39 // pred_check_branch
          %401 = sbr.rel (%p399) target = $region44
        $region43: #{tpu_custom_call.1} parent=39 // pred_region
          %s403 = ssub.s32 128, 128
          %404 = vsyncadd %s395, %s403
          %s405 = sadd.s32 %s24, %s23
          %s406 = smul.addr %s405, 128
          %s407 = scalar_lea.hbm %s5, %s406
          %s409 = sshll.u32 %s398, 4
          %s410 = int_to_ptr.vmem [resolvable:$true] %s409
          %412 = dma.vmem_to_hbm [thread:$0]  %s410, 128, %s407, %s395
        $region44: #{tpu_custom_call.1} parent=39 // pred_fallthru
          _
      $region40: #{tpu_custom_call.1} parent=5 // pred_fallthru
        _
      %p413 = scmp.le.s32.totalorder 2, %s14
      // Predicated region
      $region45: #{tpu_custom_call.1} parent=5 // pred_check
        %p414 = pneg %p413
      $region46: #{tpu_custom_call.1} parent=5 // pred_check_branch
        %416 = sbr.rel (%p414) target = $region48
      $region47: #{tpu_custom_call.1} parent=5 // pred_region
        %s417 = ssub.s32 %s14, 2
        // Predicated region
        $region49: #{tpu_custom_call.1} parent=47 // pred_check
          %p418 = pneg %p176
        $region50: #{tpu_custom_call.1} parent=47 // pred_check_branch
          %420 = sbr.rel (%p418) target = $region52
        $region51: #{tpu_custom_call.1} parent=47 // pred_region
          %s421 = sand.u32 %s161, 1
          %s422 = scalar_lea.sflag [#allocation4], %s421
          %s423 = sand.u32 %s161, 1
          %s424 = smul.addr %s423, 8
          %s425 = scalar_lea.vmem [#allocation3], %s424
          %426 = dma.done %s422, 128
        $region52: #{tpu_custom_call.1} parent=47 // pred_fallthru
          _
      $region48: #{tpu_custom_call.1} parent=5 // pred_fallthru
        _
    $region6: #{tpu_custom_call.1} parent=1 // loop_footer
      %s18 = sadd.s32 1, %s14
    $region7: #{tpu_custom_call.1} parent=1 // loop_footer_branch
      %13 = sbr.rel target = $region3
    $region8: #{tpu_custom_call.1} parent=1 // loop_exit
      _
    %427 = vsyncpa [#allocation4], 1
    %s428 = scalar_lea.sflag [#allocation4], 1
    %429 = vsyncpa %s428, 1

</llo_original>
